<compile_context>
chip_gen: v6e
topology: v6e:2x2x1
jax: 0.10.0
libtpu: 0.0.40
codegen_flags: <defaults>
</compile_context>

<pallas_src>
import math

import jax
import jax.numpy as jnp
import numpy as np
from jax.experimental import pallas as pl
from jax.experimental.pallas import tpu as pltpu

# ----- module hyper-parameters (small, consistent with the PyTorch __init__) -----
B, CIN, COUT = 2, 4, 8
H = W = 16
HW = H * W
LANES = B * HW                 # 512: batch packed along the lane axis
K = 3
KK = K * K
CK = CIN * KK                  # 36: flattened (CIN, K, K) reduction axis
PAD = K // 2
STYLE_DIM = 32
S2 = STYLE_DIM // 2            # style split size
SPATIAL_DIM = 16               # == H == W
SDSD = SPATIAL_DIM * SPATIAL_DIM
EPS = 1e-6                     # matches the module reference used in prior rounds

CONV_SCALE = 1.0 / math.sqrt(CIN * K * K)   # self.scale
MOD_SCALE = 1.0 / math.sqrt(S2)             # EqualLinear scale (lr_mul=1)
SPAT_SCALE = 1.0 / math.sqrt(S2)


def _conv_kernel(cw_ref, x_ref, scale_ref, o_ref):
    # cw_ref   : (COUT, CK)    bf16  conv weight (CONV_SCALE folded in)
    # x_ref    : (CK, B*HW)    bf16  im2col'd, channel-style-modulated input
    # scale_ref: (COUT, B*HW)  f32   demod(b,cout) * spatial_style(b,hw), precomputed
    # o_ref    : (COUT, B*HW)  f32   lane-dense (512-wide, unmasked vst)
    acc = jnp.dot(cw_ref[...], x_ref[...], preferred_element_type=jnp.float32)
    o_ref[...] = (acc * scale_ref[...]).astype(o_ref.dtype)


def channel_spatial_modulated_conv2d(x, style_in, params):
    conv_w = params["conv_w"]          # (COUT, CIN, K, K)  (PyTorch self.weight[0])
    mod_w = params["mod_w"]            # (CIN, S2)
    mod_b = params["mod_b"]            # (CIN,)
    spat_w = params["spat_w"]          # (SDSD, S2)
    spat_b = params["spat_b"]          # (SDSD,)

    style_chan = style_in[:, :S2]
    style_spatial = style_in[:, S2:]

    # ---- channel style (EqualLinear), f32, tiny ----
    style = (style_chan * MOD_SCALE) @ mod_w.T + mod_b                 # (B, CIN)

    # Fold the channel modulation into x (shift-invariant w.r.t. the 3x3 taps):
    # (cw ⊙ st) @ x_cols == cw @ (st ⊙ x_cols).
    x_mod = x * style[:, :, None, None]                                # (B, CIN, H, W)

    # ---- demodulation in the wrapper (no per-sample reduce/rsqrt in-kernel) ----
    cw_flat = (CONV_SCALE * conv_w).reshape(COUT, CK)                  # (COUT, 36)
    w2_sum = (cw_flat ** 2).reshape(COUT, CIN, KK).sum(-1)             # (COUT, CIN)
    demod = jax.lax.rsqrt((style ** 2) @ w2_sum.T + EPS)               # (B, COUT)

    # ---- spatial style + spatial demod (demod_spatial == 2) ----
    # eps placement (sqrt(HW/sum + eps)) follows the module / prior reference.
    sstyle = (style_spatial * SPAT_SCALE) @ spat_w.T + spat_b          # (B, HW)
    sdemod = jnp.sqrt(float(HW) / jnp.sum(sstyle * sstyle, axis=1) + EPS)
    sstyle = sstyle * sdemod[:, None]                                  # (B, HW)

    # One merged output-scale slab: (COUT, B*HW), lane index = b*HW + hw.
    out_scale = (demod[:, :, None] * sstyle[:, None, :])               # (B, COUT, HW)
    out_scale = out_scale.transpose(1, 0, 2).reshape(COUT, LANES)

    # ---- im2col with batch packed on lanes: (CK, B*HW) ----
    x_pad = jnp.pad(x_mod, ((0, 0), (0, 0), (PAD, PAD), (PAD, PAD)))
    patches = jnp.stack(
        [x_pad[:, :, ky:ky + H, kx:kx + W] for ky in range(K) for kx in range(K)],
        axis=2)                                                        # (B, CIN, KK, H, W)
    x_cols = patches.reshape(B, CK, HW).transpose(1, 0, 2).reshape(CK, LANES)

    out = pl.pallas_call(
        _conv_kernel,
        out_shape=jax.ShapeDtypeStruct((COUT, LANES), jnp.float32),
        in_specs=[
            pl.BlockSpec(memory_space=pltpu.MemorySpace.VMEM),
            pl.BlockSpec(memory_space=pltpu.MemorySpace.VMEM),
            pl.BlockSpec(memory_space=pltpu.MemorySpace.VMEM),
        ],
        out_specs=pl.BlockSpec(memory_space=pltpu.MemorySpace.VMEM),
    )(cw_flat.astype(jnp.bfloat16), x_cols.astype(jnp.bfloat16), out_scale)

    out = out.reshape(COUT, B, HW).transpose(1, 0, 2).reshape(B, COUT, H, W)
    return out.astype(x.dtype)


def ref_forward(x, style_in, params):
    """Pure-JAX f32 reference mirroring the PyTorch forward (same config)."""
    conv_w, mod_w, mod_b = params["conv_w"], params["mod_w"], params["mod_b"]
    spat_w, spat_b = params["spat_w"], params["spat_b"]
    style_chan, style_spatial = style_in[:, :S2], style_in[:, S2:]

    style = style_chan @ (mod_w * MOD_SCALE).T + mod_b                  # (B, CIN)
    weight = CONV_SCALE * conv_w[None] * style[:, None, :, None, None]  # (B,COUT,CIN,K,K)
    demod = jax.lax.rsqrt(jnp.sum(weight ** 2, axis=(2, 3, 4)) + EPS)
    weight = weight * demod[:, :, None, None, None]

    xg = x.reshape(1, B * CIN, H, W)
    wg = weight.reshape(B * COUT, CIN, K, K)
    out = jax.lax.conv_general_dilated(
        xg, wg, (1, 1), ((PAD, PAD), (PAD, PAD)),
        dimension_numbers=("NCHW", "OIHW", "NCHW"), feature_group_count=B)
    out = out.reshape(B, COUT, H, W)

    sstyle = style_spatial @ (spat_w * SPAT_SCALE).T + spat_b           # (B, SDSD)
    sdemod = jnp.sqrt(H * W / jnp.sum(sstyle ** 2, axis=1) + EPS)
    sstyle = sstyle * sdemod[:, None]
    return out * sstyle.reshape(B, 1, H, W)


if __name__ == "__main__":
    key = jax.random.PRNGKey(0)
    ks = jax.random.split(key, 5)
    x = jax.random.normal(ks[0], (B, CIN, H, W), jnp.float32)
    style_in = jax.random.normal(ks[1], (B, STYLE_DIM), jnp.float32)
    params = dict(
        conv_w=jax.random.normal(ks[2], (COUT, CIN, K, K), jnp.float32),  # torch.randn(1,out,in,k,k)
        mod_w=jax.random.normal(ks[3], (CIN, S2), jnp.float32),           # EqualLinear weight
        mod_b=jnp.ones((CIN,), jnp.float32),                              # bias_init=1
        spat_w=jax.random.normal(ks[4], (SDSD, S2), jnp.float32),
        spat_b=jnp.ones((SDSD,), jnp.float32),                            # bias_init=1
    )

    fwd = jax.jit(channel_spatial_modulated_conv2d)
    out = jax.block_until_ready(fwd(x, style_in, params))
    ref = jax.block_until_ready(ref_forward(x, style_in, params))
    # Tolerance reflects bf16 MXU operands (f32 accumulation / f32 scaling).
    np.testing.assert_allclose(np.asarray(out), np.asarray(ref), rtol=5e-2, atol=5e-2)
    print("KERNEL_OK")
</pallas_src>

<mosaic_0001>
module attributes {stable_mosaic.version = 11 : i64} {
  func.func @_conv_kernel(%arg0: memref<8x36xbf16, #tpu.memory_space<vmem>>, %arg1: memref<36x512xbf16, #tpu.memory_space<vmem>>, %arg2: memref<8x512xf32, #tpu.memory_space<vmem>>, %arg3: memref<8x512xf32, #tpu.memory_space<vmem>>) attributes {dimension_semantics = [], scalar_prefetch = 0 : i64, scratch_operands = 0 : i64, tpu.core_type = #tpu.core_type<tc>} {
    %c0 = arith.constant 0 : index
    %c0_0 = arith.constant 0 : index
    %0 = vector.load %arg0[%c0, %c0_0] : memref<8x36xbf16, #tpu.memory_space<vmem>>, vector<8x36xbf16>
    %c0_1 = arith.constant 0 : index
    %c0_2 = arith.constant 0 : index
    %1 = vector.load %arg1[%c0_1, %c0_2] : memref<36x512xbf16, #tpu.memory_space<vmem>>, vector<36x512xbf16>
    %cst = arith.constant dense<0.000000e+00> : vector<8x512xf32>
    %2 = tpu.matmul %0, %1, %cst {dimension_numbers = #tpu.dot_dimension_numbers<[1], [0], [0], [1], [0, 0, 1, 1], [], []>} : vector<8x36xbf16>, vector<36x512xbf16>, vector<8x512xf32> -> vector<8x512xf32>
    %c0_3 = arith.constant 0 : index
    %c0_4 = arith.constant 0 : index
    %3 = vector.load %arg2[%c0_3, %c0_4] : memref<8x512xf32, #tpu.memory_space<vmem>>, vector<8x512xf32>
    %4 = arith.mulf %2, %3 : vector<8x512xf32>
    %c0_5 = arith.constant 0 : index
    %c0_6 = arith.constant 0 : index
    %5 = vector.load %arg3[%c0_5, %c0_6] : memref<8x512xf32, #tpu.memory_space<vmem>>, vector<8x512xf32>
    tpu.vector_store %arg3[%c0_5, %c0_6], %4 {strides = array<i32>} : memref<8x512xf32, #tpu.memory_space<vmem>>, vector<8x512xf32>,
    return
  }
}

</mosaic_0001>

<llo_original>
// kernel: channel_spatial_modulated_conv2d.1
$region0: #{channel_spatial_modulated_conv2d.1}
  #allocation0 [shape = 'u32[]', space=smem, size = 0x4, offset = 0x4, fixed_abs, tag = 'smem constant byte address 0x4 - core index']
  #allocation1 [shape = 'u32[144,128]{1,0:T(1,128)}', space=vmem, size = 0x12000, scoped, tag = 'internal scratch']
  %s0 = inlined_call_operand.vmem [shape: bf16[8,36], index: 0, kind: input, shape index: {}]
  %s1 = inlined_call_operand.vmem [shape: bf16[36,512], index: 1, kind: input, shape index: {}]
  %s2 = inlined_call_operand.vmem [shape: f32[8,512], index: 2, kind: input, shape index: {}]
  %s3 = inlined_call_operand.vmem [shape: f32[8,512], index: 3, kind: output, shape index: {}]
  %s4 = sld [smem:[#allocation0]]
  $region22: #{channel_spatial_modulated_conv2d.1} parent=0
    _
  %s6 = ssub.s32 1, %s4
  %s7 = scalar_select 0, %s6, %s4
  // Predicated region
  $region2: #{channel_spatial_modulated_conv2d.1} parent=0 // pred_check
    _
  $region3: #{channel_spatial_modulated_conv2d.1} parent=0 // pred_check_branch
    %9 = sbr.rel (0) target = $region5
  $region4: #{channel_spatial_modulated_conv2d.1} parent=0 // pred_region
    _
  $region5: #{channel_spatial_modulated_conv2d.1} parent=0 // pred_fallthru
    _
  // Predicated region
  $region6: #{channel_spatial_modulated_conv2d.1} parent=0 // pred_check
    _
  $region7: #{channel_spatial_modulated_conv2d.1} parent=0 // pred_check_branch
    %11 = sbr.rel (0) target = $region9
  $region8: #{channel_spatial_modulated_conv2d.1} parent=0 // pred_region
    _
  $region9: #{channel_spatial_modulated_conv2d.1} parent=0 // pred_fallthru
    _
  // Predicated region
  $region10: #{channel_spatial_modulated_conv2d.1} parent=0 // pred_check
    _
  $region11: #{channel_spatial_modulated_conv2d.1} parent=0 // pred_check_branch
    %13 = sbr.rel (0) target = $region13
  $region12: #{channel_spatial_modulated_conv2d.1} parent=0 // pred_region
    _
  $region13: #{channel_spatial_modulated_conv2d.1} parent=0 // pred_fallthru
    _
  %v15 = vld [vmem:[%s0] sm:$0xf]
  %v16 = vld [vmem:[%s1] sm:$0xff]
  %v17 = vld [vmem:[%s1 + $0x8] sm:$0xff]
  %v18 = vld [vmem:[%s1 + $0x10] sm:$0xff]
  %v19 = vld [vmem:[%s1 + $0x18] sm:$0xff]
  %v20 = vld [vmem:[%s1 + $0x20] sm:$0xff]
  %v21 = vld [vmem:[%s1 + $0x28] sm:$0xff]
  %v22 = vld [vmem:[%s1 + $0x30] sm:$0xff]
  %v23 = vld [vmem:[%s1 + $0x38] sm:$0xff]
  %v24 = vld [vmem:[%s1 + $0x40] sm:$0x33]
  %v25 = vld [vmem:[%s1 + $0x48] sm:$0x33]
  %v36 = vunpack.c.l.b16 %v16
  %v37 = vunpack.c.h.b16 %v16
  %v38 = vunpack.c.l.b16 %v17
  %v39 = vunpack.c.h.b16 %v17
  %v40 = vunpack.c.l.b16 %v18
  %v41 = vunpack.c.h.b16 %v18
  %v42 = vunpack.c.l.b16 %v19
  %v43 = vunpack.c.h.b16 %v19
  %v44 = vunpack.c.l.b16 %v20
  %v45 = vunpack.c.h.b16 %v20
  %v46 = vunpack.c.l.b16 %v21
  %v47 = vunpack.c.h.b16 %v21
  %v48 = vunpack.c.l.b16 %v22
  %v49 = vunpack.c.h.b16 %v22
  %v50 = vunpack.c.l.b16 %v23
  %v51 = vunpack.c.h.b16 %v23
  %v52 = vunpack.c.l.b16 %v24
  %v53 = vunpack.c.h.b16 %v24
  %v54 = vunpack.c.l.b16 %v25
  %v55 = vunpack.c.h.b16 %v25
  %v56 = vpack.c.b16 %v40, %v36
  %v57 = vpack.c.b16 %v41, %v37
  %v58 = vpack.c.b16 %v42, %v38
  %v59 = vpack.c.b16 %v43, %v39
  %v60 = vpack.c.b16 %v48, %v44
  %v61 = vpack.c.b16 %v49, %v45
  %v62 = vpack.c.b16 %v50, %v46
  %v63 = vpack.c.b16 %v51, %v47
  %v64 = vpack.c.b16 %v52, %v52
  %v65 = vpack.c.b16 %v53, %v53
  %v66 = vpack.c.b16 %v54, %v54
  %v67 = vpack.c.b16 %v55, %v55
  %vm76 = vcmask 293888
  %v78 = vsel %vm76, %v15, 0
  %vm80 = vcmask 1041408
  %v82 = vsel %vm80, %v64, 0
  %v85 = vsel %vm80, %v65, 0
  %v88 = vsel %vm80, %v66, 0
  %v91 = vsel %vm80, %v67, 0
  %93 = vmatprep.subr.bf16.mxu0 0
  %94 = vmatpush1.bf16.msra.mxu0 0
  %95 = vmatprep.subr.bf16.mxu0 0
  %96 = vmatpush1.bf16.msra.mxu0 0
  %97 = vmatprep.subr.bf16.mxu0 0
  %98 = vmatpush1.bf16.msra.mxu0 0
  %99 = vmatprep.subr.bf16.mxu0 0
  %100 = vmatpush1.bf16.msra.mxu0 0
  %101 = vmatprep.subr.bf16.mxu0 0
  %102 = vmatpush1.bf16.msra.mxu0 0
  %103 = vmatprep.subr.bf16.mxu0 %v85
  %104 = vmatpush1.bf16.msra.mxu0 %v82
  %105 = vmatprep.subr.bf16.mxu0 %v61
  %106 = vmatpush1.bf16.msra.mxu0 %v60
  %107 = vmatprep.subr.bf16.mxu0 %v57
  %108 = vmatpush1.bf16.msra.mxu0 %v56
  %109 = vmatprep.subr.bf16.mxu0 0
  %110 = vmatpush2.bf16.msra.mxu0 0
  %111 = vmatprep.subr.bf16.mxu0 0
  %112 = vmatpush2.bf16.msra.mxu0 0
  %113 = vmatprep.subr.bf16.mxu0 0
  %114 = vmatpush2.bf16.msra.mxu0 0
  %115 = vmatprep.subr.bf16.mxu0 0
  %116 = vmatpush2.bf16.msra.mxu0 0
  %117 = vmatprep.subr.bf16.mxu0 0
  %118 = vmatpush2.bf16.msra.mxu0 0
  %119 = vmatprep.subr.bf16.mxu0 0
  %120 = vmatpush2.bf16.msra.mxu0 0
  %121 = vmatprep.subr.bf16.mxu0 0
  %122 = vmatpush2.bf16.msra.mxu0 0
  %123 = vmatprep.subr.bf16.mxu0 0
  %124 = vmatpush2.bf16.msra.mxu0 0
  %125 = vmatprep.mubr.bf16.mxu0 0
  %126 = vmatmul.mubr.bf16.gmra.mxu0 %v78
  %v127 = vpop.f32.mrf.mxu0
  %v128 = vadd.f32 0.0, %v127
  %v129 = vpop.f32.mrf.mxu0
  %v130 = vadd.f32 0.0, %v129
  %v131 = vpop.f32.mrf.mxu0
  %v132 = vpop.f32.mrf.mxu0
  %133 = vdwg.mxu0
  %134 = vmatprep.subr.bf16.mxu0 0
  %135 = vmatpush1.bf16.msra.mxu0 0
  %136 = vmatprep.subr.bf16.mxu0 0
  %137 = vmatpush1.bf16.msra.mxu0 0
  %138 = vmatprep.subr.bf16.mxu0 0
  %139 = vmatpush1.bf16.msra.mxu0 0
  %140 = vmatprep.subr.bf16.mxu0 0
  %141 = vmatpush1.bf16.msra.mxu0 0
  %142 = vmatprep.subr.bf16.mxu0 0
  %143 = vmatpush1.bf16.msra.mxu0 0
  %144 = vmatprep.subr.bf16.mxu0 %v91
  %145 = vmatpush1.bf16.msra.mxu0 %v88
  %146 = vmatprep.subr.bf16.mxu0 %v63
  %147 = vmatpush1.bf16.msra.mxu0 %v62
  %148 = vmatprep.subr.bf16.mxu0 %v59
  %149 = vmatpush1.bf16.msra.mxu0 %v58
  %150 = vmatprep.subr.bf16.mxu0 0
  %151 = vmatpush2.bf16.msra.mxu0 0
  %152 = vmatprep.subr.bf16.mxu0 0
  %153 = vmatpush2.bf16.msra.mxu0 0
  %154 = vmatprep.subr.bf16.mxu0 0
  %155 = vmatpush2.bf16.msra.mxu0 0
  %156 = vmatprep.subr.bf16.mxu0 0
  %157 = vmatpush2.bf16.msra.mxu0 0
  %158 = vmatprep.subr.bf16.mxu0 0
  %159 = vmatpush2.bf16.msra.mxu0 0
  %160 = vmatprep.subr.bf16.mxu0 0
  %161 = vmatpush2.bf16.msra.mxu0 0
  %162 = vmatprep.subr.bf16.mxu0 0
  %163 = vmatpush2.bf16.msra.mxu0 0
  %164 = vmatprep.subr.bf16.mxu0 0
  %165 = vmatpush2.bf16.msra.mxu0 0
  %166 = vmatprep.mubr.bf16.mxu0 0
  %167 = vmatmul.mubr.bf16.gmra.mxu0 %v78
  %v168 = vpop.f32.mrf.mxu0
  %v169 = vadd.f32 0.0, %v168
  %v170 = vpop.f32.mrf.mxu0
  %v171 = vadd.f32 0.0, %v170
  %v172 = vpop.f32.mrf.mxu0
  %v173 = vpop.f32.mrf.mxu0
  %174 = vdwg.mxu0
  %v175 = vld [vmem:[%s2] sm:$0xff]
  %v176 = vld [vmem:[%s2 + $0x8] sm:$0xff]
  %v177 = vld [vmem:[%s2 + $0x10] sm:$0xff]
  %v178 = vld [vmem:[%s2 + $0x18] sm:$0xff]
  %v179 = vmul.f32 %v128, %v175
  %v180 = vmul.f32 %v130, %v176
  %v181 = vmul.f32 %v169, %v177
  %v182 = vmul.f32 %v171, %v178
  %183 = vst [vmem:[%s3] sm:$0xff] %v179
  %184 = vst [vmem:[%s3 + $0x8] sm:$0xff] %v180
  %185 = vst [vmem:[%s3 + $0x10] sm:$0xff] %v181
  %186 = vst [vmem:[%s3 + $0x18] sm:$0xff] %v182
  // Predicated region
  $region14: #{channel_spatial_modulated_conv2d.1} parent=0 // pred_check
    _
  $region15: #{channel_spatial_modulated_conv2d.1} parent=0 // pred_check_branch
    %188 = sbr.rel (0) target = $region17
  $region16: #{channel_spatial_modulated_conv2d.1} parent=0 // pred_region
    _
  $region17: #{channel_spatial_modulated_conv2d.1} parent=0 // pred_fallthru
    _
  // Predicated region
  $region18: #{channel_spatial_modulated_conv2d.1} parent=0 // pred_check
    _
  $region19: #{channel_spatial_modulated_conv2d.1} parent=0 // pred_check_branch
    %190 = sbr.rel (0) target = $region21
  $region20: #{channel_spatial_modulated_conv2d.1} parent=0 // pred_region
    _
  $region21: #{channel_spatial_modulated_conv2d.1} parent=0 // pred_fallthru
    _

</llo_original>
